<compile_context>
chip_gen: v7x
topology: tpu7x:2x2x1
jax: 0.10.0
libtpu: 0.0.40
codegen_flags: <defaults>
</compile_context>

<pallas_src>
import functools

import jax
import jax.numpy as jnp
from jax.experimental import pallas as pl
from jax.experimental.pallas import tpu as pltpu

_LANE = 128
_SUB = 8                   # f32 sublane tile
_LAB_SUB = 32              # int8 sublane tile (labels in eval mode)
_TARGET_BLOCK_ROWS = 2048  # 1 MiB f32 per input block
_NCORES = 2                # megacore split; harmless on single-TC chips


def _accumulate(out_ref, contrib, j):
    """Zero the per-core accumulator on the first inner step, then add the
    block reduced along the sublane-group axis (VPU-only, no cross-lane)."""

    @pl.when(j == 0)
    def _():
        out_ref[...] = jnp.zeros_like(out_ref)

    out_ref[...] += jnp.sum(contrib.reshape(-1, _SUB, _LANE), axis=0)


def _train_kernel(np_ref, p_ref, out_ref, *, pos_weight, total_n, block_rows,
                  inner):
    c = pl.program_id(0)
    j = pl.program_id(1)
    # Intended (unclamped) block id.  The DMA'd block index is clamped in the
    # index_map; masking uses the intended id so clamped re-reads of the last
    # block contribute exactly zero.
    blk = c * inner + j
    base = blk * (block_rows * _LANE)

    row_ids = jax.lax.broadcasted_iota(jnp.int32, (block_rows, _LANE), 0)
    col_ids = jax.lax.broadcasted_iota(jnp.int32, (block_rows, _LANE), 1)
    local = row_ids * _LANE + col_ids

    num_pos = np_ref[0]
    is_pos = local < (num_pos - base)            # num_pos <= total_n
    valid = local < (total_n - base)
    is_neg = valid & jnp.logical_not(is_pos)

    p = p_ref[...]
    # Single log per element: log(p) for positives, log(1 - p) for negatives,
    # log(1) = 0 for padded / out-of-range positions (also kills any garbage).
    x = jnp.where(is_pos, p, jnp.where(is_neg, 1.0 - p, 1.0))
    w = jnp.where(is_pos, pos_weight, jnp.where(is_neg, 1.0 - pos_weight, 0.0))
    contrib = w * (-jnp.log(x))

    _accumulate(out_ref, contrib, j)


def _eval_kernel(p_ref, lab_ref, out_ref, *, pos_weight, total_n, block_rows,
                 inner):
    c = pl.program_id(0)
    j = pl.program_id(1)
    blk = c * inner + j
    base = blk * (block_rows * _LANE)

    row_ids = jax.lax.broadcasted_iota(jnp.int32, (block_rows, _LANE), 0)
    col_ids = jax.lax.broadcasted_iota(jnp.int32, (block_rows, _LANE), 1)
    local = row_ids * _LANE + col_ids
    valid = local < (total_n - base)

    lab = lab_ref[...]                           # int8 (padded with -1)
    is_pos = valid & (lab == 1)
    is_neg = valid & (lab == 0)

    p = p_ref[...]
    # Reference eval branch uses -log(p) for BOTH classes; match it.
    x = jnp.where(is_pos | is_neg, p, 1.0)
    w = jnp.where(is_pos, pos_weight, jnp.where(is_neg, 1.0 - pos_weight, 0.0))
    contrib = w * (-jnp.log(x))

    _accumulate(out_ref, contrib, j)


def _prep_2d(x, granularity, pad_value):
    """Reshape a 1-D vector to (rows, 128) with rows a multiple of
    `granularity`.  No copy if the length already lines up."""
    n = x.shape[0]
    chunk = granularity * _LANE
    padded = ((n + chunk - 1) // chunk) * chunk
    if padded != n:
        x = jnp.pad(x, (0, padded - n), constant_values=pad_value)
    return x.reshape(padded // _LANE, _LANE)


def bce_with_weighted_loss(probs, pos_weight, num_pos=None, labels=None,
                           eval=False):
    """Pallas implementation of BCEWithWeightedLoss.forward. Returns a scalar."""
    probs = probs.astype(jnp.float32)
    n = probs.shape[0]
    pos_weight = float(pos_weight)

    gran = _LAB_SUB if eval else _SUB
    p2d = _prep_2d(probs, gran, 1.0)             # pad value is log-safe
    rows = p2d.shape[0]
    block_rows = min(_TARGET_BLOCK_ROWS, rows)   # multiple of 8 (32 in eval)
    num_blocks = pl.cdiv(rows, block_rows)
    inner = pl.cdiv(num_blocks, _NCORES)
    grid = (_NCORES, inner)

    def p_index(c, j, *prefetch):
        # Clamp so the DMA never walks off the array; in-kernel masking uses
        # the unclamped id so duplicated blocks contribute zero.
        return (jnp.minimum(c * inner + j, num_blocks - 1), 0)

    def out_index(c, j, *prefetch):
        return (c, 0, 0)

    p_spec = pl.BlockSpec((block_rows, _LANE), p_index)
    out_spec = pl.BlockSpec((None, _SUB, _LANE), out_index)
    out_shape = jax.ShapeDtypeStruct((_NCORES, _SUB, _LANE), jnp.float32)
    cparams = pltpu.CompilerParams(
        dimension_semantics=("parallel", "arbitrary"))

    if not eval:
        meta = jnp.asarray([num_pos], dtype=jnp.int32)
        kernel = functools.partial(_train_kernel, pos_weight=pos_weight,
                                   total_n=n, block_rows=block_rows,
                                   inner=inner)
        out = pl.pallas_call(
            kernel,
            out_shape=out_shape,
            grid_spec=pltpu.PrefetchScalarGridSpec(
                num_scalar_prefetch=1,
                grid=grid,
                in_specs=[p_spec],
                out_specs=out_spec,
            ),
            compiler_params=cparams,
        )(meta, p2d)
    else:
        lab2d = _prep_2d(labels.astype(jnp.int8), gran, -1)
        kernel = functools.partial(_eval_kernel, pos_weight=pos_weight,
                                   total_n=n, block_rows=block_rows,
                                   inner=inner)
        out = pl.pallas_call(
            kernel,
            out_shape=out_shape,
            grid_spec=pl.GridSpec(
                grid=grid,
                in_specs=[p_spec, p_spec],
                out_specs=out_spec,
            ),
            compiler_params=cparams,
        )(p2d, lab2d)

    # Final tiny cross-lane reduction (2*8*128 elems) done by XLA.
    return jnp.sum(out)


if __name__ == "__main__":
    key = jax.random.PRNGKey(0)
    k1, k2 = jax.random.split(key)

    pos_weight = 0.7
    num_pos = 8
    neg_ratio = 2
    n = num_pos * (1 + neg_ratio)          # (num_pos,) ++ (num_pos*neg_ratio,)

    probs = jax.random.uniform(k1, (n,), jnp.float32, minval=0.05, maxval=0.95)

    # --- train mode ---
    loss = bce_with_weighted_loss(probs, pos_weight, num_pos=num_pos, eval=False)
    loss = jax.block_until_ready(loss)
    ref = (pos_weight * jnp.sum(-jnp.log(probs[:num_pos]))
           + (1.0 - pos_weight) * jnp.sum(-jnp.log(1.0 - probs[num_pos:])))
    assert jnp.allclose(loss, ref, rtol=1e-5, atol=1e-5), (loss, ref)

    # --- eval mode ---
    labels = (jax.random.uniform(k2, (n,)) > 0.5).astype(jnp.int32)
    loss_eval = bce_with_weighted_loss(probs, pos_weight, labels=labels, eval=True)
    loss_eval = jax.block_until_ready(loss_eval)
    pos_m = labels == 1
    neg_m = labels == 0
    ref_eval = (pos_weight * jnp.sum(jnp.where(pos_m, -jnp.log(probs), 0.0))
                + (1.0 - pos_weight) * jnp.sum(jnp.where(neg_m, -jnp.log(probs), 0.0)))
    assert jnp.allclose(loss_eval, ref_eval, rtol=1e-5, atol=1e-5), (loss_eval, ref_eval)

    print("KERNEL_OK")
</pallas_src>

<mosaic_0001>
module attributes {stable_mosaic.version = 11 : i64} {
  func.func @_train_kernel(%arg0: i32, %arg1: i32, %arg2: memref<1xi32, #tpu.memory_space<smem>>, %arg3: memref<8x128xf32, #tpu.memory_space<vmem>>, %arg4: memref<1x8x128xf32, #tpu.memory_space<vmem>>) attributes {dimension_semantics = [#tpu.dimension_semantics<parallel>, #tpu.dimension_semantics<arbitrary>], iteration_bounds = array<i64: 2, 1>, scalar_prefetch = 1 : i64, scratch_operands = 0 : i64, tpu.core_type = #tpu.core_type<tc>, window_params = [{transform_indices = @transform_0, window_bounds = array<i64: 8, 128>}, {transform_indices = @transform_1, window_bounds = array<i64: 1, 8, 128>}]} {
    %c1_i32 = arith.constant 1 : i32
    %0 = arith.muli %arg0, %c1_i32 : i32
    %1 = arith.addi %0, %arg1 : i32
    %c1024_i32 = arith.constant 1024 : i32
    %2 = arith.muli %1, %c1024_i32 : i32
    %3 = tpu.iota {dimensions = array<i32: 0>} : vector<8x128xi32>
    %4 = tpu.iota {dimensions = array<i32: 1>} : vector<8x128xi32>
    %c128_i32 = arith.constant 128 : i32
    %5 = vector.broadcast %c128_i32 : i32 to vector<8x128xi32>
    %6 = arith.muli %3, %5 : vector<8x128xi32>
    %7 = arith.addi %6, %4 : vector<8x128xi32>
    %c0 = arith.constant 0 : index
    %8 = memref.load %arg2[%c0] : memref<1xi32, #tpu.memory_space<smem>>
    %9 = arith.subi %8, %2 : i32
    %10 = vector.broadcast %9 : i32 to vector<8x128xi32>
    %11 = arith.cmpi slt, %7, %10 : vector<8x128xi32>
    %c24_i32 = arith.constant 24 : i32
    %12 = arith.subi %c24_i32, %2 : i32
    %13 = vector.broadcast %12 : i32 to vector<8x128xi32>
    %14 = arith.cmpi slt, %7, %13 : vector<8x128xi32>
    %cst = arith.constant dense<true> : vector<8x128xi1>
    %15 = arith.xori %11, %cst : vector<8x128xi1>
    %16 = arith.andi %14, %15 : vector<8x128xi1>
    %c0_0 = arith.constant 0 : index
    %c0_1 = arith.constant 0 : index
    %17 = vector.load %arg3[%c0_0, %c0_1] : memref<8x128xf32, #tpu.memory_space<vmem>>, vector<8x128xf32>
    %cst_2 = arith.constant 1.000000e+00 : f32
    %18 = vector.broadcast %cst_2 : f32 to vector<8x128xf32>
    %19 = arith.subf %18, %17 : vector<8x128xf32>
    %cst_3 = arith.constant 1.000000e+00 : f32
    %20 = vector.broadcast %cst_3 : f32 to vector<8x128xf32>
    %21 = arith.select %16, %19, %20 : vector<8x128xi1>, vector<8x128xf32>
    %22 = arith.select %11, %17, %21 : vector<8x128xi1>, vector<8x128xf32>
    %cst_4 = arith.constant 3.000000e-01 : f32
    %cst_5 = arith.constant 0.000000e+00 : f32
    %23 = vector.broadcast %cst_4 : f32 to vector<8x128xf32>
    %24 = vector.broadcast %cst_5 : f32 to vector<8x128xf32>
    %25 = arith.select %16, %23, %24 : vector<8x128xi1>, vector<8x128xf32>
    %cst_6 = arith.constant 0.699999988 : f32
    %26 = vector.broadcast %cst_6 : f32 to vector<8x128xf32>
    %27 = arith.select %11, %26, %25 : vector<8x128xi1>, vector<8x128xf32>
    %28 = math.log %22 : vector<8x128xf32>
    %cst_7 = arith.constant 0.000000e+00 : f32
    %29 = vector.broadcast %cst_7 : f32 to vector<8x128xf32>
    %30 = arith.subf %29, %28 : vector<8x128xf32>
    %31 = arith.mulf %27, %30 : vector<8x128xf32>
    %c0_i32 = arith.constant 0 : i32
    %32 = arith.cmpi eq, %arg1, %c0_i32 : i32
    %33 = arith.extui %32 : i1 to i32
    %c0_i32_8 = arith.constant 0 : i32
    %34 = arith.cmpi ne, %33, %c0_i32_8 : i32
    scf.if %34 {
      %cst_16 = arith.constant 0.000000e+00 : f32
      %43 = vector.broadcast %cst_16 : f32 to vector<8x128xf32>
      %c0_17 = arith.constant 0 : index
      %c0_18 = arith.constant 0 : index
      %c0_19 = arith.constant 0 : index
      %44 = vector.load %arg4[%c0_17, %c0_18, %c0_19] : memref<1x8x128xf32, #tpu.memory_space<vmem>>, vector<1x8x128xf32>
      %45 = vector.shape_cast %44 : vector<1x8x128xf32> to vector<8x128xf32>
      %46 = vector.shape_cast %43 : vector<8x128xf32> to vector<1x8x128xf32>
      tpu.vector_store %arg4[%c0_17, %c0_18, %c0_19], %46 {strides = array<i32>} : memref<1x8x128xf32, #tpu.memory_space<vmem>>, vector<1x8x128xf32>,
    } else {
    }
    %c0_9 = arith.constant 0 : index
    %c0_10 = arith.constant 0 : index
    %c0_11 = arith.constant 0 : index
    %35 = vector.load %arg4[%c0_9, %c0_10, %c0_11] : memref<1x8x128xf32, #tpu.memory_space<vmem>>, vector<1x8x128xf32>
    %36 = vector.shape_cast %35 : vector<1x8x128xf32> to vector<8x128xf32>
    %37 = vector.shape_cast %31 : vector<8x128xf32> to vector<1x8x128xf32>
    %cst_12 = arith.constant dense<0.000000e+00> : vector<8x128xf32>
    %38 = vector.multi_reduction <add>, %37, %cst_12 [0] : vector<1x8x128xf32> to vector<8x128xf32>
    %39 = arith.addf %36, %38 : vector<8x128xf32>
    %c0_13 = arith.constant 0 : index
    %c0_14 = arith.constant 0 : index
    %c0_15 = arith.constant 0 : index
    %40 = vector.load %arg4[%c0_13, %c0_14, %c0_15] : memref<1x8x128xf32, #tpu.memory_space<vmem>>, vector<1x8x128xf32>
    %41 = vector.shape_cast %40 : vector<1x8x128xf32> to vector<8x128xf32>
    %42 = vector.shape_cast %39 : vector<8x128xf32> to vector<1x8x128xf32>
    tpu.vector_store %arg4[%c0_13, %c0_14, %c0_15], %42 {strides = array<i32>} : memref<1x8x128xf32, #tpu.memory_space<vmem>>, vector<1x8x128xf32>,
    return
  }
  func.func @transform_0(%arg0: i32, %arg1: i32, %arg2: memref<1xi32, #tpu.memory_space<smem>>) -> (i32, i32) {
    %c1_i32 = arith.constant 1 : i32
    %0 = arith.muli %arg0, %c1_i32 : i32
    %1 = arith.addi %0, %arg1 : i32
    %c0_i32 = arith.constant 0 : i32
    %2 = arith.minsi %1, %c0_i32 : i32
    %c0_i32_0 = arith.constant 0 : i32
    %c0_i32_1 = arith.constant 0 : i32
    return %2, %c0_i32_0 : i32, i32
  }
  func.func @transform_1(%arg0: i32, %arg1: i32, %arg2: memref<1xi32, #tpu.memory_space<smem>>) -> (i32, i32, i32) {
    %c0_i32 = arith.constant 0 : i32
    %c0_i32_0 = arith.constant 0 : i32
    %c0_i32_1 = arith.constant 0 : i32
    return %arg0, %c0_i32, %c0_i32_0 : i32, i32, i32
  }
}

</mosaic_0001>

<llo_original>
// kernel: tpu_custom_call.1
$region0: #{tpu_custom_call.1}
  #allocation0 [shape = 'u32[]', space=smem, size = 0x4, offset = 0x4, fixed_abs, tag = 'smem constant byte address 0x4 - core index']
  #allocation1 [shape = 'u32[144,128]{1,0:T(1,128)}', space=vmem, size = 0x12000, scoped, tag = 'internal scratch']
  #allocation2 [shape = 's32[1]{0}', space=sflag, size = 0x4, scoped, tag = 'scoped memory for tpu_custom_call.1']
  #allocation3 [shape = 's32[1]{0:T(128)S(6)}', space=smem, size = 0x200, scoped, tag = 'prefetched SMEM operand 0']
  %s0 = inlined_call_operand.<no memory space> [shape: s32[1], index: 0, kind: input, shape index: {}]
  %s1 = inlined_call_operand.hbm [shape: f32[8,128], index: 1, kind: input, shape index: {}]
  %s2 = inlined_call_operand.hbm [shape: f32[2,8,128], index: 2, kind: output, shape index: {}]
  %s3 = sld [smem:[#allocation0]]
  $region45: #{tpu_custom_call.1} parent=0
    _
  %s5 = ssub.s32 1, %s3
  %s6 = scalar_select 0, %s5, %s3
  %7 = sst [smem:[#allocation3]] %s0
  $region1: #{tpu_custom_call.1} parent=0
    #allocation4 [shape = 'u8[8192]{0}', space=vmem, size = 0x2000, scoped, tag = 'input window, operand 1']
    #allocation5 [shape = 's32[2]{0}', space=sflag, size = 0x8, scoped, tag = 'scoped memory for tpu_custom_call.1']
    #allocation6 [shape = 's32[2]{0}', space=sflag, size = 0x8, scoped, tag = 'scoped memory for tpu_custom_call.1']
    #allocation7 [shape = 'u8[8192]{0}', space=vmem, size = 0x2000, scoped, tag = 'output window, operand 0']
    %8 = vsyncpa [#allocation5], 0
    %s9 = scalar_lea.sflag [#allocation5], 1
    %10 = vsyncpa %s9, 0
    %11 = vsyncpa [#allocation6], 0
    %s12 = scalar_lea.sflag [#allocation6], 1
    %13 = vsyncpa %s12, 0
    loop: start=0, step=1, limit=4
    $region2: #{tpu_custom_call.1} parent=1 // loop_pre_header
      _
    $region3: #{tpu_custom_call.1} parent=1 // loop_header
      %s15 = sphi 0, %s19
      %p16 = scmp.ge.s32.totalorder %s15, 4
      %s22 = sphi 0, %s34
      %s23 = sphi 0, %s30
      %s24 = sphi 0, %s22
      %s25 = sphi 0, %s23
      %s26 = sphi 0, %s24
      %s27 = sphi 0, %s25
      %s43 = sphi 0, %s45
      %s46 = sphi 0, %s43
      %s47 = sphi 0, %s46
      %s63 = sphi 0, %s47
      %s69 = sphi 0, %s71
      %s72 = sphi 0, %s69
      %s73 = sphi 0, %s72
      %s89 = sphi 0, %s73
    $region4: #{tpu_custom_call.1} parent=1 // loop_header_branch
      %18 = sbr.rel (%p16) target = $region8
    $region5: #{tpu_custom_call.1} parent=1 // loop_body
      %s20 = ssub.s32 %s15, 1
      %s21 = ssub.s32 %s15, 2
      %s28 = sadd.s32 1, %s23
      %p29 = scmp.ge.s32.totalorder %s28, 1
      %s30 = scalar_select %p29, 0, %s28
      %s31 = sadd.s32 1, %s22
      %s32 = scalar_select %p29, %s31, %s22
      %p33 = scmp.ge.s32.totalorder %s32, 2
      %s34 = scalar_select %p33, 0, %s32
      %s35 = sadd.s32 %s22, %s23
      %p36 = scmp.lt.s32.totalorder %s35, 0
      %s37 = scalar_select %p36, %s35, 0
      %s38 = sadd.s32 %s34, %s30
      %p39 = scmp.lt.s32.totalorder %s38, 0
      %s40 = scalar_select %p39, %s38, 0
      %s41 = ssub.s32 %s37, %s40
      %p42 = scmp.eq.s32.totalorder %s41, 0
      %s44 = sadd.s32 %s43, 1
      %s45 = scalar_select %p42, %s43, %s44
      %p48 = pneg %p42
      %p49 = scmp.eq.s32.totalorder %s15, 1
      %p50 = por %p48, %p49
      %p51 = scmp.ne.s32.totalorder %s43, %s46
      %p52 = scmp.eq.s32.totalorder %s15, 0
      %p53 = por %p51, %p52
      %p54 = scmp.ne.s32.totalorder %s43, %s46
      %p55 = scmp.eq.s32.totalorder %s20, 1
      %p56 = por %p54, %p55
      %p57 = scmp.ne.s32.totalorder %s46, %s47
      %p58 = scmp.eq.s32.totalorder %s20, 0
      %p59 = por %p57, %p58
      %p60 = scmp.ne.s32.totalorder %s46, %s47
      %p61 = scmp.eq.s32.totalorder %s21, 1
      %p62 = por %p60, %p61
      %p64 = scmp.ne.s32.totalorder %s47, %s63
      %p65 = scmp.eq.s32.totalorder %s21, 0
      %p66 = por %p64, %p65
      %s67 = ssub.s32 %s22, %s34
      %p68 = scmp.eq.s32.totalorder %s67, 0
      %s70 = sadd.s32 %s69, 1
      %s71 = scalar_select %p68, %s69, %s70
      %p74 = pneg %p68
      %p75 = scmp.eq.s32.totalorder %s15, 1
      %p76 = por %p74, %p75
      %p77 = scmp.ne.s32.totalorder %s69, %s72
      %p78 = scmp.eq.s32.totalorder %s15, 0
      %p79 = por %p77, %p78
      %p80 = scmp.ne.s32.totalorder %s69, %s72
      %p81 = scmp.eq.s32.totalorder %s20, 1
      %p82 = por %p80, %p81
      %p83 = scmp.ne.s32.totalorder %s72, %s73
      %p84 = scmp.eq.s32.totalorder %s20, 0
      %p85 = por %p83, %p84
      %p86 = scmp.ne.s32.totalorder %s72, %s73
      %p87 = scmp.eq.s32.totalorder %s21, 1
      %p88 = por %p86, %p87
      %p90 = scmp.ne.s32.totalorder %s73, %s89
      %p91 = scmp.eq.s32.totalorder %s21, 0
      %p92 = por %p90, %p91
      %p93 = scmp.le.s32.totalorder 1, %s15
      %p94 = scmp.lt.s32.totalorder %s15, 3
      %p95 = pnand %p93, %p94
      %p96 = pneg %p95
      // Predicated region
      $region9: #{tpu_custom_call.1} parent=5 // pred_check
        _
      $region10: #{tpu_custom_call.1} parent=5 // pred_check_branch
        %98 = sbr.rel (%p95) target = $region12
      $region11: #{tpu_custom_call.1} parent=5 // pred_region
        %s99 = ssub.s32 %s15, 1
      $region12: #{tpu_custom_call.1} parent=5 // pred_fallthru
        _
      %p100 = scmp.lt.s32.totalorder %s15, 2
      // Predicated region
      $region13: #{tpu_custom_call.1} parent=5 // pred_check
        %p101 = pneg %p100
      $region14: #{tpu_custom_call.1} parent=5 // pred_check_branch
        %103 = sbr.rel (%p101) target = $region16
      $region15: #{tpu_custom_call.1} parent=5 // pred_region
        // Predicated region
        $region17: #{tpu_custom_call.1} parent=15 // pred_check
          %p104 = pneg %p53
        $region18: #{tpu_custom_call.1} parent=15 // pred_check_branch
          %106 = sbr.rel (%p104) target = $region20
        $region19: #{tpu_custom_call.1} parent=15 // pred_region
          %s107 = sand.u32 %s43, 1
          %s108 = scalar_lea.sflag [#allocation5], %s107
          %s109 = sand.u32 %s43, 1
          %s110 = smul.addr %s109, 8
          %s111 = scalar_lea.vmem [#allocation4], %s110
          %s112 = sadd.s32 %s22, %s23
          %p113 = scmp.lt.s32.totalorder %s112, 0
          %s114 = scalar_select %p113, %s112, 0
          %s116 = ssub.s32 128, 128
          %117 = vsyncadd %s108, %s116
          %s118 = smul.addr %s114, 128
          %s119 = scalar_lea.hbm %s1, %s118
          %s121 = sshll.u32 %s111, 4
          %s122 = int_to_ptr.vmem [resolvable:$true] %s121
          %124 = dma.hbm_to_vmem [thread:$0]  %s119, 128, %s122, %s108
        $region20: #{tpu_custom_call.1} parent=15 // pred_fallthru
          _
      $region16: #{tpu_custom_call.1} parent=5 // pred_fallthru
        _
      %p125 = scmp.le.s32.totalorder 1, %s15
      %p126 = scmp.lt.s32.totalorder %s15, 3
      %p127 = pnand %p125, %p126
      %p128 = pneg %p127
      // Predicated region
      $region21: #{tpu_custom_call.1} parent=5 // pred_check
        _
      $region22: #{tpu_custom_call.1} parent=5 // pred_check_branch
        %130 = sbr.rel (%p127) target = $region24
      $region23: #{tpu_custom_call.1} parent=5 // pred_region
        %s131 = ssub.s32 %s15, 1
        %s132 = sand.u32 %s46, 1
        %s133 = scalar_lea.sflag [#allocation5], %s132
        %s134 = sand.u32 %s46, 1
        %s135 = smul.addr %s134, 8
        %s136 = scalar_lea.vmem [#allocation4], %s135
        // Predicated region
        $region25: #{tpu_custom_call.1} parent=23 // pred_check
          %p137 = pneg %p59
        $region26: #{tpu_custom_call.1} parent=23 // pred_check_branch
          %139 = sbr.rel (%p137) target = $region28
        $region27: #{tpu_custom_call.1} parent=23 // pred_region
          %140 = dma.done %s133, 128
        $region28: #{tpu_custom_call.1} parent=23 // pred_fallthru
          _
        %s141 = sand.u32 %s46, 1
        %s142 = scalar_lea.sflag [#allocation5], %s141
        %s143 = sand.u32 %s46, 1
        %s144 = smul.addr %s143, 8
        %s145 = scalar_lea.vmem [#allocation4], %s144
        %p146 = pneg %p59
        %p147 = pneg %p56
        %p148 = pneg %p85
        %p149 = pneg %p82
        %s150 = sand.u32 %s72, 1
        %s151 = scalar_lea.sflag [#allocation6], %s150
        %s152 = sand.u32 %s72, 1
        %s153 = smul.addr %s152, 8
        %s154 = scalar_lea.vmem [#allocation7], %s153
        %s155 = sadd.s32 %s24, %s25
        %p156 = scmp.lt.s32.totalorder %s155, 0
        %s157 = scalar_select %p156, %s155, 0
        %s158 = sadd.s32 %s24, %s25
        %s159 = smul.u32 %s158, 1024
        %v160 = vlaneseq
        %v161 = vshrl.u32 %v160, 7
        %v162 = vlaneseq
        %v163 = vand.u32 %v162, 127
        %v164 = vmul.u32 %v161, 128
        %v165 = vadd.s32 %v164, %v163
        %s166 = sld [smem:[#allocation3]]
        %s167 = ssub.s32 %s166, %s159
        %v168 = vstv %s167
        %vm169 = vcmp.lt.s32.totalorder %v165, %v168
        %s170 = ssub.s32 24, %s159
        %v171 = vstv %s170
        %vm172 = vcmp.lt.s32.totalorder %v165, %v171
        %vm173 = vmxor %vm169, 1
        %vm174 = vmand %vm172, %vm173
        %v175 = vld [vmem:[%s136] sm:$0xff]
        %v176 = vsub.f32 1.0, %v175
        %v177 = vsel %vm174, %v176, 1.0
        %v178 = vsel %vm169, %v175, %v177
        %v179 = vsel %vm174, 0.3, 0.0
        %v180 = vsel %vm169, 0.7, %v179
        %v181 = vlog2.pop %v178
        %v182 = vmul.f32 %v181, 0.6931472
        %v183 = vsub.f32 0.0, %v182
        %v184 = vmul.f32 %v180, %v183
        %p185 = scmp.eq.s32.totalorder %s25, 0
        // Predicated region
        $region29: #{tpu_custom_call.1} parent=23 // pred_check
          %p186 = pneg %p185
        $region30: #{tpu_custom_call.1} parent=23 // pred_check_branch
          %188 = sbr.rel (%p186) target = $region32
        $region31: #{tpu_custom_call.1} parent=23 // pred_region
          %189 = vst [vmem:[%s154] sm:$0xff] 0.0
        $region32: #{tpu_custom_call.1} parent=23 // pred_fallthru
          _
        %v190 = vld [vmem:[%s154] sm:$0xff]
        %v191 = vadd.f32 %v184, 0.0
        %v192 = vadd.f32 %v190, %v191
        %193 = vst [vmem:[%s154] sm:$0xff] %v192
        %s194 = sand.u32 %s72, 1
        %s195 = scalar_lea.sflag [#allocation6], %s194
        %s196 = sand.u32 %s72, 1
        %s197 = smul.addr %s196, 8
        %s198 = scalar_lea.vmem [#allocation7], %s197
        // Predicated region
        $region33: #{tpu_custom_call.1} parent=23 // pred_check
          %p199 = pneg %p82
        $region34: #{tpu_custom_call.1} parent=23 // pred_check_branch
          %201 = sbr.rel (%p199) target = $region36
        $region35: #{tpu_custom_call.1} parent=23 // pred_region
          %s203 = ssub.s32 128, 128
          %204 = vsyncadd %s195, %s203
          %s205 = smul.addr %s24, 128
          %s206 = scalar_lea.hbm %s2, %s205
          %s208 = sshll.u32 %s198, 4
          %s209 = int_to_ptr.vmem [resolvable:$true] %s208
          %211 = dma.vmem_to_hbm [thread:$0]  %s209, 128, %s206, %s195
        $region36: #{tpu_custom_call.1} parent=23 // pred_fallthru
          _
      $region24: #{tpu_custom_call.1} parent=5 // pred_fallthru
        _
      %p212 = scmp.le.s32.totalorder 2, %s15
      // Predicated region
      $region37: #{tpu_custom_call.1} parent=5 // pred_check
        %p213 = pneg %p212
      $region38: #{tpu_custom_call.1} parent=5 // pred_check_branch
        %215 = sbr.rel (%p213) target = $region40
      $region39: #{tpu_custom_call.1} parent=5 // pred_region
        %s216 = ssub.s32 %s15, 2
        // Predicated region
        $region41: #{tpu_custom_call.1} parent=39 // pred_check
          %p217 = pneg %p88
        $region42: #{tpu_custom_call.1} parent=39 // pred_check_branch
          %219 = sbr.rel (%p217) target = $region44
        $region43: #{tpu_custom_call.1} parent=39 // pred_region
          %s220 = sand.u32 %s73, 1
          %s221 = scalar_lea.sflag [#allocation6], %s220
          %s222 = sand.u32 %s73, 1
          %s223 = smul.addr %s222, 8
          %s224 = scalar_lea.vmem [#allocation7], %s223
          %225 = dma.done %s221, 128
        $region44: #{tpu_custom_call.1} parent=39 // pred_fallthru
          _
      $region40: #{tpu_custom_call.1} parent=5 // pred_fallthru
        _
    $region6: #{tpu_custom_call.1} parent=1 // loop_footer
      %s19 = sadd.s32 1, %s15
    $region7: #{tpu_custom_call.1} parent=1 // loop_footer_branch
      %14 = sbr.rel target = $region3
    $region8: #{tpu_custom_call.1} parent=1 // loop_exit
      _
    %226 = vsyncpa [#allocation5], 1
    %s227 = scalar_lea.sflag [#allocation5], 1
    %228 = vsyncpa %s227, 1
    %229 = vsyncpa [#allocation6], 1
    %s230 = scalar_lea.sflag [#allocation6], 1
    %231 = vsyncpa %s230, 1

</llo_original>
